<compile_context>
chip_gen: v5e
topology: v5e:2x2
jax: 0.10.0
libtpu: 0.0.40
codegen_flags: <defaults>
</compile_context>

<pallas_src>
import jax
import jax.numpy as jnp
from jax import lax
from jax.experimental import pallas as pl
from jax.experimental.pallas import tpu as pltpu

CP = 128                       # padded channel width (lane-dense channel axis)
BN_EPS = 1e-5
VMEM_LIMIT = 32 * 1024 * 1024  # per-step blocks are a few MB; fits v5e/v6e/v7x


# ----------------------------- small helpers -----------------------------
def _round_up(x, m):
    return -(-x // m) * m


def _pick_rows(total, target):
    """Largest power-of-two row tile <= target that divides `total` (mult of 8)."""
    cands = [target]
    t = target
    while t > 8:
        t //= 2
        cands.append(t)
    for c in cands:
        if c <= total and total % c == 0 and c % 8 == 0:
            return c
    return total


def _pick_tile_h(H, W):
    """Row-band height: prefer M = tile_h*W >= 256 (fills v6e/v7x MXU) with a modest
    (tile_h*W, 9*CP) patch scratch.  TODO(synk): sweep per generation / per shape."""
    for t in (32, 16, 8, 4, 2, 1):
        if H % t == 0 and t * W <= 2048:
            return t
    return H


# ----------------------------- Pallas kernels -----------------------------
def conv1_kernel(p_ref, w_ref, y_ref, stats_ref):
    """One row block of conv1: lane-dense im2col patches (built in the wrapper) x GEMM
    weight -> raw conv output, plus per-channel (sum, sum_sq) BN partial statistics
    accumulated across the inner ('arbitrary') grid axis."""
    acc = jnp.dot(p_ref[...], w_ref[...], preferred_element_type=jnp.float32)  # (Rb, CP)
    y_ref[...] = acc

    s1 = jnp.sum(acc, axis=0, keepdims=True)          # (1, CP)
    s2 = jnp.sum(acc * acc, axis=0, keepdims=True)    # (1, CP)

    @pl.when(pl.program_id(1) == 0)
    def _():
        stats_ref[...] = jnp.zeros_like(stats_ref)

    # single full-tile (unmasked) RMW: rows 0/1 = sum/sum_sq, rows 2..7 unused
    stats_ref[...] = stats_ref[...] + jnp.concatenate(
        [s1, s2, jnp.zeros((6, CP), jnp.float32)], axis=0)


def _make_conv2_kernel(tile_h, W, nb):
    """conv2 row-band kernel with BN1-apply + ReLU fused in, lane-dense im2col at CP=128."""
    th, wo = tile_h, W

    def kernel(top_ref, mid_ref, bot_ref, w_ref, ss_ref, y_ref, stats_ref,
               h_ref, patch_ref):
        cp = CP
        scale = ss_ref[0:1, :]          # (1, CP) BN1 scale (0 on padded channels)
        shift = ss_ref[1:2, :]          # (1, CP) BN1 shift

        f = pl.program_id(0) * pl.num_programs(1) + pl.program_id(1)   # flat band index
        b = f % nb                                                      # band within image
        hdt = h_ref.dtype

        # Synthesize the SAME zero padding directly in the VMEM band scratch.
        h_ref[0:1, :, :] = jnp.zeros((1, wo + 2, cp), hdt)
        h_ref[th + 1:th + 2, :, :] = jnp.zeros((1, wo + 2, cp), hdt)
        h_ref[:, 0:1, :] = jnp.zeros((th + 2, 1, cp), hdt)
        h_ref[:, wo + 1:wo + 2, :] = jnp.zeros((th + 2, 1, cp), hdt)

        # Fused BN1 + ReLU (conv1's bias is absorbed exactly by train-mode BN).
        h_ref[1:th + 1, 1:wo + 1, :] = jnp.maximum(
            mid_ref[...] * scale + shift, 0.0).astype(hdt)

        @pl.when(b != 0)               # top halo row is a real row of the same image
        def _():
            h_ref[0:1, 1:wo + 1, :] = jnp.maximum(
                top_ref[...] * scale + shift, 0.0).astype(hdt)

        @pl.when(b != nb - 1)          # bottom halo row is a real row of the same image
        def _():
            h_ref[th + 1:th + 2, 1:wo + 1, :] = jnp.maximum(
                bot_ref[...] * scale + shift, 0.0).astype(hdt)

        # Lane-dense im2col: tap t occupies lanes [t*CP, (t+1)*CP) (128-aligned stores).
        t = 0
        for dy in range(3):
            for dx in range(3):
                patch_ref[:, t * cp:(t + 1) * cp] = (
                    h_ref[dy:dy + th, dx:dx + wo, :]
                    .reshape(th * wo, cp).astype(patch_ref.dtype))
                t += 1

        acc = jnp.dot(patch_ref[...], w_ref[...],
                      preferred_element_type=jnp.float32)       # (th*wo, CP)
        y_ref[...] = acc

        s1 = jnp.sum(acc, axis=0, keepdims=True)
        s2 = jnp.sum(acc * acc, axis=0, keepdims=True)

        @pl.when(pl.program_id(1) == 0)
        def _():
            stats_ref[...] = jnp.zeros_like(stats_ref)

        stats_ref[...] = stats_ref[...] + jnp.concatenate(
            [s1, s2, jnp.zeros((6, cp), jnp.float32)], axis=0)

    return kernel


def bn_relu_kernel(y_ref, ss_ref, o_ref):
    """Per-channel affine normalize (scale/shift precomputed from batch stats) + ReLU."""
    o_ref[...] = jnp.maximum(y_ref[...] * ss_ref[0:1, :] + ss_ref[1:2, :], 0.0)


# ----------------------------- pallas_call wrappers -----------------------------
def conv1_matmul(patches, w1p):
    """Raw conv1 via one GEMM per row block.  Returns y1 (R, CP) f32 and BN stat sums."""
    R, k1p = patches.shape
    Rb = _pick_rows(R, 1024)
    NB = R // Rb
    # TODO(synk): on v7x (2 TCs) pad NB to even / split along N to guarantee P=2;
    #             on single-core chips P=1 avoids the extra stats block.
    P = 2 if NB % 2 == 0 else 1
    B = NB // P

    y, stats = pl.pallas_call(
        conv1_kernel,
        out_shape=(jax.ShapeDtypeStruct((R, CP), jnp.float32),
                   jax.ShapeDtypeStruct((P * 8, CP), jnp.float32)),
        grid=(P, B),
        in_specs=[pl.BlockSpec((Rb, k1p), lambda p, i: (p * B + i, 0)),
                  pl.BlockSpec((k1p, CP), lambda p, i: (0, 0))],
        out_specs=(pl.BlockSpec((Rb, CP), lambda p, i: (p * B + i, 0)),
                   pl.BlockSpec((8, CP), lambda p, i: (p, 0))),
        compiler_params=pltpu.CompilerParams(
            dimension_semantics=("parallel", "arbitrary"),
            vmem_limit_bytes=VMEM_LIMIT),
    )(patches, w1p)

    stats = stats.reshape(P, 8, CP).sum(axis=0)
    return y, stats[0], stats[1]


def conv2_fused(y1_flat, ss1, w2p, N, H, W):
    """3x3 SAME conv over BN1+ReLU(y1) with the normalization fused in-kernel.
    Halo rows come from two extra 1-row blocked windows of the same y1 array."""
    R = N * H * W
    rows = y1_flat.reshape(N * H, W, CP)
    tile_h = _pick_tile_h(H, W)
    assert H % tile_h == 0
    assert W % 8 == 0, "TODO(synk): pad W to a multiple of 8 for general widths"
    nb = H // tile_h
    NB = N * nb
    P = 2 if NB % 2 == 0 else 1
    B = NB // P
    Rb = tile_h * W
    K2 = 9 * CP

    def top_map(p, i):
        f = p * B + i
        return (jnp.maximum(f * tile_h - 1, 0), 0, 0)

    def mid_map(p, i):
        return (p * B + i, 0, 0)

    def bot_map(p, i):
        f = p * B + i
        return (jnp.minimum((f + 1) * tile_h, N * H - 1), 0, 0)

    kernel = _make_conv2_kernel(tile_h, W, nb)

    y2, stats = pl.pallas_call(
        kernel,
        out_shape=(jax.ShapeDtypeStruct((R, CP), jnp.float32),
                   jax.ShapeDtypeStruct((P * 8, CP), jnp.float32)),
        grid=(P, B),
        in_specs=[
            pl.BlockSpec((1, W, CP), top_map),        # top halo row (masked at image top)
            pl.BlockSpec((tile_h, W, CP), mid_map),   # band interior
            pl.BlockSpec((1, W, CP), bot_map),        # bottom halo row
            pl.BlockSpec((K2, CP), lambda p, i: (0, 0)),
            pl.BlockSpec((8, CP), lambda p, i: (0, 0)),
        ],
        out_specs=(
            pl.BlockSpec((Rb, CP), lambda p, i: (p * B + i, 0)),
            pl.BlockSpec((8, CP), lambda p, i: (p, 0)),
        ),
        scratch_shapes=[
            pltpu.VMEM((tile_h + 2, W + 2, CP), jnp.float32),  # BN+ReLU'd, zero-bordered band
            pltpu.VMEM((Rb, K2), w2p.dtype),                   # lane-dense im2col patches
        ],
        compiler_params=pltpu.CompilerParams(
            dimension_semantics=("parallel", "arbitrary"),
            vmem_limit_bytes=VMEM_LIMIT),
    )(rows, rows, rows, w2p, ss1)

    stats = stats.reshape(P, 8, CP).sum(axis=0)
    return y2, stats[0], stats[1]


def bn_relu_apply(y, ss):
    """Final BN-apply + ReLU with large lane-dense tiles (target 2048 rows per block)."""
    R, cp = y.shape
    assert cp == CP
    r_tile = _pick_rows(R, 2048)
    return pl.pallas_call(
        bn_relu_kernel,
        out_shape=jax.ShapeDtypeStruct((R, CP), jnp.float32),
        grid=(R // r_tile,),
        in_specs=[pl.BlockSpec((r_tile, CP), lambda i: (i, 0)),
                  pl.BlockSpec((8, CP), lambda i: (0, 0))],
        out_specs=pl.BlockSpec((r_tile, CP), lambda i: (i, 0)),
        compiler_params=pltpu.CompilerParams(
            dimension_semantics=("parallel",),
            vmem_limit_bytes=VMEM_LIMIT),
    )(y, ss)


# ----------------------------- XLA glue -----------------------------
def im2col_3x3(x_nhwc, dtype):
    """Lane-dense im2col of the input: (N,H,W,Cin) -> (N*H*W, 9*Cin rounded up to 128).
    Tap order (dy, dx) row-major, input channel fastest (matches prep_conv1_weight)."""
    N, H, W, Cin = x_nhwc.shape
    xp = jnp.pad(x_nhwc, ((0, 0), (1, 1), (1, 1), (0, 0)))
    taps = [xp[:, dy:dy + H, dx:dx + W, :] for dy in range(3) for dx in range(3)]
    p = jnp.concatenate(taps, axis=-1)                 # (N, H, W, 9*Cin)
    k1 = 9 * Cin
    k1p = _round_up(k1, 128)
    p = jnp.pad(p, ((0, 0), (0, 0), (0, 0), (0, k1p - k1)))
    return p.reshape(N * H * W, k1p).astype(dtype)


def finalize_bn(s_sum, s_sq, count, gamma_p, beta_p):
    """Batch-mean/var (biased, train mode) -> packed (8, CP) per-channel scale/shift."""
    mean = s_sum / count
    var = jnp.maximum(s_sq / count - mean * mean, 0.0)
    scale = gamma_p * lax.rsqrt(var + BN_EPS)
    shift = beta_p - mean * scale
    return jnp.concatenate([scale[None, :], shift[None, :],
                            jnp.zeros((6, CP), jnp.float32)], axis=0)


def double_conv(x_nchw, params):
    """Forward pass of the PyTorch DoubleConv module (both BatchNorms in training mode)."""
    x = jnp.transpose(x_nchw, (0, 2, 3, 1))            # NCHW -> NHWC
    N, H, W, _ = x.shape
    cout = params["cout"]
    R = N * H * W
    cnt = jnp.float32(R)

    # conv1: wrapper-side lane-dense im2col -> one GEMM per row block (+ BN1 stats)
    p1 = im2col_3x3(x, params["w1"].dtype)
    y1, s1, q1 = conv1_matmul(p1, params["w1"])
    ss1 = finalize_bn(s1, q1, cnt, params["g1"], params["be1"])

    # conv2: BN1+ReLU fused in-kernel, halo rows via extra 1-row windows (+ BN2 stats)
    y2, s2, q2 = conv2_fused(y1, ss1, params["w2"], N, H, W)
    ss2 = finalize_bn(s2, q2, cnt, params["g2"], params["be2"])

    # final BN2 + ReLU, then slice the real channels back out
    h2 = bn_relu_apply(y2, ss2)
    out = h2.reshape(N, H, W, CP)[..., :cout]
    return jnp.transpose(out, (0, 3, 1, 2))            # NHWC -> NCHW


# ----------------------------- parameter preparation -----------------------------
def prep_conv1_weight(w_oihw, dtype):
    """(Cout, Cin, 3, 3) -> (9*Cin padded to 128, CP) GEMM weight."""
    cout, cin = w_oihw.shape[0], w_oihw.shape[1]
    assert cout <= CP
    k1 = 9 * cin
    k1p = _round_up(k1, 128)
    w = jnp.transpose(w_oihw, (2, 3, 1, 0)).reshape(k1, cout)
    return jnp.pad(w, ((0, k1p - k1), (0, CP - cout))).astype(dtype)


def prep_conv2_weight(w_oihw, dtype):
    """(Cout, Cin, 3, 3) -> (9*CP, CP) GEMM weight; input channels padded to CP lanes."""
    cout, cin = w_oihw.shape[0], w_oihw.shape[1]
    assert cout <= CP and cin <= CP
    w = jnp.transpose(w_oihw, (2, 3, 1, 0))                       # (3, 3, cin, cout)
    w = jnp.pad(w, ((0, 0), (0, 0), (0, CP - cin), (0, CP - cout)))
    return w.reshape(9 * CP, CP).astype(dtype)


def prep_channel_param(v):
    assert v.shape[0] <= CP
    return jnp.pad(v.astype(jnp.float32), (0, CP - v.shape[0]))


def make_params(raw, cout, matmul_dtype):
    """Kernel-side params.  Conv biases are intentionally absent: they are absorbed exactly
    by train-mode BN's mean subtraction (the reference keeps them, so the test checks it).
    matmul_dtype=jnp.bfloat16 is recommended on v6e/v7x (f32 accumulation, half DMA bytes)."""
    return {
        "cout": cout,
        "w1": prep_conv1_weight(raw["w1"], matmul_dtype),
        "w2": prep_conv2_weight(raw["w2"], matmul_dtype),
        "g1": prep_channel_param(raw["g1"]), "be1": prep_channel_param(raw["be1"]),
        "g2": prep_channel_param(raw["g2"]), "be2": prep_channel_param(raw["be2"]),
    }


# ----------------------------- pure-JAX reference (full PyTorch semantics) ----------
def ref_conv_bn_relu(x_nhwc, w_oihw, bias, gamma, beta):
    cout = w_oihw.shape[0]
    w_hwio = jnp.transpose(w_oihw, (2, 3, 1, 0))
    y = lax.conv_general_dilated(x_nhwc, w_hwio, (1, 1), "SAME",
                                 dimension_numbers=("NHWC", "HWIO", "NHWC"))
    y = y + bias.reshape(1, 1, 1, cout)
    mean = jnp.mean(y, axis=(0, 1, 2), keepdims=True)
    var = jnp.mean((y - mean) ** 2, axis=(0, 1, 2), keepdims=True)   # biased (BN training)
    y = (y - mean) * lax.rsqrt(var + BN_EPS) * gamma.reshape(1, 1, 1, cout) \
        + beta.reshape(1, 1, 1, cout)
    return jnp.maximum(y, 0.0)


def ref_double_conv(x_nchw, raw):
    x = jnp.transpose(x_nchw, (0, 2, 3, 1))
    h = ref_conv_bn_relu(x, raw["w1"], raw["b1"], raw["g1"], raw["be1"])
    h = ref_conv_bn_relu(h, raw["w2"], raw["b2"], raw["g2"], raw["be2"])
    return jnp.transpose(h, (0, 3, 1, 2))


if __name__ == "__main__":
    # DoubleConv(in_channels=4, out_channels=8) at a small spatial size (NCHW like PyTorch).
    N, Cin, Cout, H, W = 2, 4, 8, 16, 16

    key = jax.random.PRNGKey(0)
    (k_x, k_w1, k_b1, k_w2, k_b2, k_g1, k_be1, k_g2, k_be2) = jax.random.split(key, 9)

    x_nchw = jax.random.normal(k_x, (N, Cin, H, W), dtype=jnp.float32)

    bound1 = 1.0 / (Cin * 9) ** 0.5
    w1 = jax.random.uniform(k_w1, (Cout, Cin, 3, 3), jnp.float32, -bound1, bound1)
    b1 = jax.random.uniform(k_b1, (Cout,), jnp.float32, -bound1, bound1)
    bound2 = 1.0 / (Cout * 9) ** 0.5
    w2 = jax.random.uniform(k_w2, (Cout, Cout, 3, 3), jnp.float32, -bound2, bound2)
    b2 = jax.random.uniform(k_b2, (Cout,), jnp.float32, -bound2, bound2)

    g1 = 1.0 + 0.2 * jax.random.normal(k_g1, (Cout,), jnp.float32)
    be1 = 0.1 * jax.random.normal(k_be1, (Cout,), jnp.float32)
    g2 = 1.0 + 0.2 * jax.random.normal(k_g2, (Cout,), jnp.float32)
    be2 = 0.1 * jax.random.normal(k_be2, (Cout,), jnp.float32)

    raw = {"w1": w1, "b1": b1, "g1": g1, "be1": be1,
           "w2": w2, "b2": b2, "g2": g2, "be2": be2}

    ref = jax.block_until_ready(ref_double_conv(x_nchw, raw))

    # f32 MXU operands: tight check against the f32 reference (validates bias absorption too).
    out32 = jax.block_until_ready(double_conv(x_nchw, make_params(raw, Cout, jnp.float32)))
    assert out32.shape == (N, Cout, H, W) and out32.dtype == jnp.float32
    err32 = float(jnp.max(jnp.abs(out32 - ref)))
    assert jnp.allclose(out32, ref, atol=5e-4, rtol=5e-4), f"f32 max abs err {err32}"

    # bf16 MXU operands (recommended default on v6e/v7x): f32 accumulation, looser tolerance.
    outbf = jax.block_until_ready(double_conv(x_nchw, make_params(raw, Cout, jnp.bfloat16)))
    errbf = float(jnp.max(jnp.abs(outbf - ref)))
    assert jnp.allclose(outbf, ref, atol=5e-2, rtol=5e-2), f"bf16 max abs err {errbf}"

    print("KERNEL_OK")
</pallas_src>

<mosaic_0001>
module attributes {stable_mosaic.version = 11 : i64} {
  func.func @conv1_kernel(%arg0: i32, %arg1: i32, %arg2: memref<512x128xf32, #tpu.memory_space<vmem>>, %arg3: memref<128x128xf32, #tpu.memory_space<vmem>>, %arg4: memref<512x128xf32, #tpu.memory_space<vmem>>, %arg5: memref<8x128xf32, #tpu.memory_space<vmem>>) attributes {dimension_semantics = [#tpu.dimension_semantics<parallel>, #tpu.dimension_semantics<arbitrary>], iteration_bounds = array<i64: 1, 1>, scalar_prefetch = 0 : i64, scratch_operands = 0 : i64, tpu.core_type = #tpu.core_type<tc>, window_params = [{transform_indices = @transform_0, window_bounds = array<i64: 512, 128>}, {pipeline_mode = #tpu.pipeline_mode<synchronous>, transform_indices = @transform_1, window_bounds = array<i64: 128, 128>}, {transform_indices = @transform_2, window_bounds = array<i64: 512, 128>}, {transform_indices = @transform_3, window_bounds = array<i64: 8, 128>}]} {
    %c0 = arith.constant 0 : index
    %c0_0 = arith.constant 0 : index
    %0 = vector.load %arg2[%c0, %c0_0] : memref<512x128xf32, #tpu.memory_space<vmem>>, vector<512x128xf32>
    %c0_1 = arith.constant 0 : index
    %c0_2 = arith.constant 0 : index
    %1 = vector.load %arg3[%c0_1, %c0_2] : memref<128x128xf32, #tpu.memory_space<vmem>>, vector<128x128xf32>
    %cst = arith.constant dense<0.000000e+00> : vector<512x128xf32>
    %2 = tpu.matmul %0, %1, %cst {dimension_numbers = #tpu.dot_dimension_numbers<[1], [0], [0], [1], [0, 0, 1, 1], [], []>} : vector<512x128xf32>, vector<128x128xf32>, vector<512x128xf32> -> vector<512x128xf32>
    %c0_3 = arith.constant 0 : index
    %c0_4 = arith.constant 0 : index
    %3 = vector.load %arg4[%c0_3, %c0_4] : memref<512x128xf32, #tpu.memory_space<vmem>>, vector<512x128xf32>
    tpu.vector_store %arg4[%c0_3, %c0_4], %2 {strides = array<i32>} : memref<512x128xf32, #tpu.memory_space<vmem>>, vector<512x128xf32>,
    %cst_5 = arith.constant dense<0.000000e+00> : vector<128xf32>
    %4 = vector.multi_reduction <add>, %2, %cst_5 [0] : vector<512x128xf32> to vector<128xf32>
    %5 = vector.shape_cast %4 : vector<128xf32> to vector<1x128xf32>
    %6 = arith.mulf %2, %2 : vector<512x128xf32>
    %cst_6 = arith.constant dense<0.000000e+00> : vector<128xf32>
    %7 = vector.multi_reduction <add>, %6, %cst_6 [0] : vector<512x128xf32> to vector<128xf32>
    %8 = vector.shape_cast %7 : vector<128xf32> to vector<1x128xf32>
    %c0_i32 = arith.constant 0 : i32
    %9 = arith.cmpi eq, %arg1, %c0_i32 : i32
    %10 = arith.extui %9 : i1 to i32
    %c0_i32_7 = arith.constant 0 : i32
    %11 = arith.cmpi ne, %10, %c0_i32_7 : i32
    scf.if %11 {
      %cst_13 = arith.constant 0.000000e+00 : f32
      %17 = vector.broadcast %cst_13 : f32 to vector<8x128xf32>
      %c0_14 = arith.constant 0 : index
      %c0_15 = arith.constant 0 : index
      %18 = vector.load %arg5[%c0_14, %c0_15] : memref<8x128xf32, #tpu.memory_space<vmem>>, vector<8x128xf32>
      tpu.vector_store %arg5[%c0_14, %c0_15], %17 {strides = array<i32>} : memref<8x128xf32, #tpu.memory_space<vmem>>, vector<8x128xf32>,
    } else {
    }
    %c0_8 = arith.constant 0 : index
    %c0_9 = arith.constant 0 : index
    %12 = vector.load %arg5[%c0_8, %c0_9] : memref<8x128xf32, #tpu.memory_space<vmem>>, vector<8x128xf32>
    %cst_10 = arith.constant 0.000000e+00 : f32
    %13 = vector.broadcast %cst_10 : f32 to vector<6x128xf32>
    %14 = tpu.concatenate %5, %8, %13 in 0 : vector<1x128xf32>, vector<1x128xf32>, vector<6x128xf32> -> vector<8x128xf32>
    %15 = arith.addf %12, %14 : vector<8x128xf32>
    %c0_11 = arith.constant 0 : index
    %c0_12 = arith.constant 0 : index
    %16 = vector.load %arg5[%c0_11, %c0_12] : memref<8x128xf32, #tpu.memory_space<vmem>>, vector<8x128xf32>
    tpu.vector_store %arg5[%c0_11, %c0_12], %15 {strides = array<i32>} : memref<8x128xf32, #tpu.memory_space<vmem>>, vector<8x128xf32>,
    return
  }
  func.func @transform_0(%arg0: i32, %arg1: i32) -> (i32, i32) {
    %c1_i32 = arith.constant 1 : i32
    %0 = arith.muli %arg0, %c1_i32 : i32
    %1 = arith.addi %0, %arg1 : i32
    %c0_i32 = arith.constant 0 : i32
    %c0_i32_0 = arith.constant 0 : i32
    return %1, %c0_i32 : i32, i32
  }
  func.func @transform_1(%arg0: i32, %arg1: i32) -> (i32, i32) {
    %c0_i32 = arith.constant 0 : i32
    %c0_i32_0 = arith.constant 0 : i32
    %c0_i32_1 = arith.constant 0 : i32
    return %c0_i32, %c0_i32_0 : i32, i32
  }
  func.func @transform_2(%arg0: i32, %arg1: i32) -> (i32, i32) {
    %c1_i32 = arith.constant 1 : i32
    %0 = arith.muli %arg0, %c1_i32 : i32
    %1 = arith.addi %0, %arg1 : i32
    %c0_i32 = arith.constant 0 : i32
    %c0_i32_0 = arith.constant 0 : i32
    return %1, %c0_i32 : i32, i32
  }
  func.func @transform_3(%arg0: i32, %arg1: i32) -> (i32, i32) {
    %c0_i32 = arith.constant 0 : i32
    %c0_i32_0 = arith.constant 0 : i32
    return %arg0, %c0_i32 : i32, i32
  }
}

</mosaic_0001>

<llo_original>
// kernel: tpu_custom_call.1
$region0: #{tpu_custom_call.1}
  #allocation0 [shape = 'u32[]', space=smem, size = 0x4, offset = 0x4, fixed_abs, tag = 'smem constant byte address 0x4 - core index']
  #allocation1 [shape = 'u32[72,128]{1,0:T(1,128)}', space=vmem, size = 0x9000, scoped, tag = 'internal scratch']
  %s0 = inlined_call_operand.hbm [shape: f32[512,128], index: 0, kind: input, shape index: {}]
  %s1 = inlined_call_operand.hbm [shape: f32[128,128], index: 1, kind: input, shape index: {}]
  %s2 = inlined_call_operand.hbm [shape: f32[512,128], index: 2, kind: output, shape index: {0}]
  %s3 = inlined_call_operand.hbm [shape: f32[8,128], index: 3, kind: output, shape index: {1}]
  %4 = xla_tuple %s2, %s3
  %s5 = sld [smem:[#allocation0]]
  $region38: #{tpu_custom_call.1} parent=0
    _
  %s7 = ssub.s32 1, %s5
  %s8 = scalar_select 0, %s7, %s5
  $region1: #{tpu_custom_call.1} parent=0
    #allocation2 [shape = 'u8[262144]{0}', space=vmem, size = 0x40000, scoped, tag = 'input window, operand 0, single buffered']
    #allocation3 [shape = 's32[1]{0}', space=sflag, size = 0x4, scoped, tag = 'scoped memory for tpu_custom_call.1']
    #allocation4 [shape = 's32[1]{0}', space=sflag, size = 0x4, scoped, tag = 'scoped memory for tpu_custom_call.1']
    #allocation5 [shape = 'u8[65536]{0}', space=vmem, size = 0x10000, scoped, tag = 'input window, operand 1, single buffered']
    #allocation6 [shape = 's32[1]{0}', space=sflag, size = 0x4, scoped, tag = 'scoped memory for tpu_custom_call.1']
    #allocation7 [shape = 'u8[262144]{0}', space=vmem, size = 0x40000, scoped, tag = 'output window, operand 0, single buffered']
    #allocation8 [shape = 'u8[4096]{0}', space=vmem, size = 0x1000, scoped, tag = 'output window, operand 1, single buffered']
    #allocation9 [shape = 's32[1]{0}', space=sflag, size = 0x4, scoped, tag = 'scoped memory for tpu_custom_call.1']
    %9 = vsyncpa [#allocation3], 0
    %10 = vsyncpa [#allocation6], 0
    %11 = vsyncpa [#allocation4], 0
    %12 = vsyncpa [#allocation9], 0
    // Predicated region
    $region2: #{tpu_custom_call.1} parent=1 // pred_check
      _
    $region3: #{tpu_custom_call.1} parent=1 // pred_check_branch
      %14 = sbr.rel (0) target = $region5
    $region4: #{tpu_custom_call.1} parent=1 // pred_region
      %s15 = sadd.s32 0, 0
      %s16 = smul.u32 64, %s15
      %18 = vsyncadd [#allocation3], 0
      %s19 = smul.addr %s16, 8
      %s20 = scalar_lea.hbm %s0, %s19
      %s21 = sshll.u32 %s20, 4
      %s22 = int_to_ptr.hbm [resolvable:$true] %s21
      %s23 = sshll.u32 [#allocation2], 4
      %s24 = int_to_ptr.vmem [resolvable:$true] %s23
      %29 = dma.hbm_to_vmem [thread:$0]  %s22, 8192, %s24, [#allocation3], 128, 128, 8
    $region5: #{tpu_custom_call.1} parent=1 // pred_fallthru
      _
    // Predicated region
    $region6: #{tpu_custom_call.1} parent=1 // pred_check
      _
    $region7: #{tpu_custom_call.1} parent=1 // pred_check_branch
      %31 = sbr.rel (0) target = $region9
    $region8: #{tpu_custom_call.1} parent=1 // pred_region
      %33 = vsyncadd [#allocation6], 0
      %s34 = sshll.u32 %s1, 4
      %s35 = int_to_ptr.hbm [resolvable:$true] %s34
      %s36 = sshll.u32 [#allocation5], 4
      %s37 = int_to_ptr.vmem [resolvable:$true] %s36
      %42 = dma.hbm_to_vmem [thread:$0]  %s35, 2048, %s37, [#allocation6], 128, 128, 8
    $region9: #{tpu_custom_call.1} parent=1 // pred_fallthru
      _
    // Predicated region
    $region10: #{tpu_custom_call.1} parent=1 // pred_check
      _
    $region11: #{tpu_custom_call.1} parent=1 // pred_check_branch
      %44 = sbr.rel (0) target = $region13
    $region12: #{tpu_custom_call.1} parent=1 // pred_region
      %46 = dma.done [#allocation3], 8192
    $region13: #{tpu_custom_call.1} parent=1 // pred_fallthru
      _
    // Predicated region
    $region14: #{tpu_custom_call.1} parent=1 // pred_check
      _
    $region15: #{tpu_custom_call.1} parent=1 // pred_check_branch
      %48 = sbr.rel (0) target = $region17
    $region16: #{tpu_custom_call.1} parent=1 // pred_region
      %50 = dma.done [#allocation6], 2048
    $region17: #{tpu_custom_call.1} parent=1 // pred_fallthru
      _
    %s51 = sadd.s32 0, 0
    %s52 = smul.u32 64, %s51
    %s53 = sadd.s32 0, 0
    %s54 = smul.u32 64, %s53
    %v55 = vld [vmem:[#allocation2] sm:$0xff]
    %v56 = vld [vmem:[#allocation2 + $0x8] sm:$0xff]
    %v57 = vld [vmem:[#allocation2 + $0x10] sm:$0xff]
    %v58 = vld [vmem:[#allocation2 + $0x18] sm:$0xff]
    %v59 = vld [vmem:[#allocation2 + $0x20] sm:$0xff]
    %v60 = vld [vmem:[#allocation2 + $0x28] sm:$0xff]
    %v61 = vld [vmem:[#allocation2 + $0x30] sm:$0xff]
    %v62 = vld [vmem:[#allocation2 + $0x38] sm:$0xff]
    %v63 = vld [vmem:[#allocation2 + $0x40] sm:$0xff]
    %v64 = vld [vmem:[#allocation2 + $0x48] sm:$0xff]
    %v65 = vld [vmem:[#allocation2 + $0x50] sm:$0xff]
    %v66 = vld [vmem:[#allocation2 + $0x58] sm:$0xff]
    %v67 = vld [vmem:[#allocation2 + $0x60] sm:$0xff]
    %v68 = vld [vmem:[#allocation2 + $0x68] sm:$0xff]
    %v69 = vld [vmem:[#allocation2 + $0x70] sm:$0xff]
    %v70 = vld [vmem:[#allocation2 + $0x78] sm:$0xff]
    %v71 = vld [vmem:[#allocation2 + $0x80] sm:$0xff]
    %v72 = vld [vmem:[#allocation2 + $0x88] sm:$0xff]
    %v73 = vld [vmem:[#allocation2 + $0x90] sm:$0xff]
    %v74 = vld [vmem:[#allocation2 + $0x98] sm:$0xff]
    %v75 = vld [vmem:[#allocation2 + $0xa0] sm:$0xff]
    %v76 = vld [vmem:[#allocation2 + $0xa8] sm:$0xff]
    %v77 = vld [vmem:[#allocation2 + $0xb0] sm:$0xff]
    %v78 = vld [vmem:[#allocation2 + $0xb8] sm:$0xff]
    %v79 = vld [vmem:[#allocation2 + $0xc0] sm:$0xff]
    %v80 = vld [vmem:[#allocation2 + $0xc8] sm:$0xff]
    %v81 = vld [vmem:[#allocation2 + $0xd0] sm:$0xff]
    %v82 = vld [vmem:[#allocation2 + $0xd8] sm:$0xff]
    %v83 = vld [vmem:[#allocation2 + $0xe0] sm:$0xff]
    %v84 = vld [vmem:[#allocation2 + $0xe8] sm:$0xff]
    %v85 = vld [vmem:[#allocation2 + $0xf0] sm:$0xff]
    %v86 = vld [vmem:[#allocation2 + $0xf8] sm:$0xff]
    %v87 = vld [vmem:[#allocation2 + $0x100] sm:$0xff]
    %v88 = vld [vmem:[#allocation2 + $0x108] sm:$0xff]
    %v89 = vld [vmem:[#allocation2 + $0x110] sm:$0xff]
    %v90 = vld [vmem:[#allocation2 + $0x118] sm:$0xff]
    %v91 = vld [vmem:[#allocation2 + $0x120] sm:$0xff]
    %v92 = vld [vmem:[#allocation2 + $0x128] sm:$0xff]
    %v93 = vld [vmem:[#allocation2 + $0x130] sm:$0xff]
    %v94 = vld [vmem:[#allocation2 + $0x138] sm:$0xff]
    %v95 = vld [vmem:[#allocation2 + $0x140] sm:$0xff]
    %v96 = vld [vmem:[#allocation2 + $0x148] sm:$0xff]
    %v97 = vld [vmem:[#allocation2 + $0x150] sm:$0xff]
    %v98 = vld [vmem:[#allocation2 + $0x158] sm:$0xff]
    %v99 = vld [vmem:[#allocation2 + $0x160] sm:$0xff]
    %v100 = vld [vmem:[#allocation2 + $0x168] sm:$0xff]
    %v101 = vld [vmem:[#allocation2 + $0x170] sm:$0xff]
    %v102 = vld [vmem:[#allocation2 + $0x178] sm:$0xff]
    %v103 = vld [vmem:[#allocation2 + $0x180] sm:$0xff]
    %v104 = vld [vmem:[#allocation2 + $0x188] sm:$0xff]
    %v105 = vld [vmem:[#allocation2 + $0x190] sm:$0xff]
    %v106 = vld [vmem:[#allocation2 + $0x198] sm:$0xff]
    %v107 = vld [vmem:[#allocation2 + $0x1a0] sm:$0xff]
    %v108 = vld [vmem:[#allocation2 + $0x1a8] sm:$0xff]
    %v109 = vld [vmem:[#allocation2 + $0x1b0] sm:$0xff]
    %v110 = vld [vmem:[#allocation2 + $0x1b8] sm:$0xff]
    %v111 = vld [vmem:[#allocation2 + $0x1c0] sm:$0xff]
    %v112 = vld [vmem:[#allocation2 + $0x1c8] sm:$0xff]
    %v113 = vld [vmem:[#allocation2 + $0x1d0] sm:$0xff]
    %v114 = vld [vmem:[#allocation2 + $0x1d8] sm:$0xff]
    %v115 = vld [vmem:[#allocation2 + $0x1e0] sm:$0xff]
    %v116 = vld [vmem:[#allocation2 + $0x1e8] sm:$0xff]
    %v117 = vld [vmem:[#allocation2 + $0x1f0] sm:$0xff]
    %v118 = vld [vmem:[#allocation2 + $0x1f8] sm:$0xff]
    %v119 = vld [vmem:[#allocation5] sm:$0xff]
    %v120 = vld [vmem:[#allocation5 + $0x8] sm:$0xff]
    %v121 = vld [vmem:[#allocation5 + $0x10] sm:$0xff]
    %v122 = vld [vmem:[#allocation5 + $0x18] sm:$0xff]
    %v123 = vld [vmem:[#allocation5 + $0x20] sm:$0xff]
    %v124 = vld [vmem:[#allocation5 + $0x28] sm:$0xff]
    %v125 = vld [vmem:[#allocation5 + $0x30] sm:$0xff]
    %v126 = vld [vmem:[#allocation5 + $0x38] sm:$0xff]
    %v127 = vld [vmem:[#allocation5 + $0x40] sm:$0xff]
    %v128 = vld [vmem:[#allocation5 + $0x48] sm:$0xff]
    %v129 = vld [vmem:[#allocation5 + $0x50] sm:$0xff]
    %v130 = vld [vmem:[#allocation5 + $0x58] sm:$0xff]
    %v131 = vld [vmem:[#allocation5 + $0x60] sm:$0xff]
    %v132 = vld [vmem:[#allocation5 + $0x68] sm:$0xff]
    %v133 = vld [vmem:[#allocation5 + $0x70] sm:$0xff]
    %v134 = vld [vmem:[#allocation5 + $0x78] sm:$0xff]
    %135 = vmatpush.msra.mxu0 %v134
    %136 = vmatpush.msra.mxu0 %v133
    %137 = vmatpush.msra.mxu0 %v132
    %138 = vmatpush.msra.mxu0 %v131
    %139 = vmatpush.msra.mxu0 %v130
    %140 = vmatpush.msra.mxu0 %v129
    %141 = vmatpush.msra.mxu0 %v128
    %142 = vmatpush.msra.mxu0 %v127
    %143 = vmatpush.msra.mxu0 %v126
    %144 = vmatpush.msra.mxu0 %v125
    %145 = vmatpush.msra.mxu0 %v124
    %146 = vmatpush.msra.mxu0 %v123
    %147 = vmatpush.msra.mxu0 %v122
    %148 = vmatpush.msra.mxu0 %v121
    %149 = vmatpush.msra.mxu0 %v120
    %150 = vmatpush.msra.mxu0 %v119
    %151 = vmatmul.f32.gmra.mxu0 %v55
    %v152 = vpop.f32.mrf.mxu0
    %v153 = vadd.f32 0.0, %v152
    %154 = vmatmul.f32.gmra.mxu0 %v56
    %v155 = vpop.f32.mrf.mxu0
    %v156 = vadd.f32 0.0, %v155
    %157 = vmatmul.f32.gmra.mxu0 %v57
    %v158 = vpop.f32.mrf.mxu0
    %v159 = vadd.f32 0.0, %v158
    %160 = vmatmul.f32.gmra.mxu0 %v58
    %v161 = vpop.f32.mrf.mxu0
    %v162 = vadd.f32 0.0, %v161
    %163 = vmatmul.f32.gmra.mxu0 %v59
    %v164 = vpop.f32.mrf.mxu0
    %v165 = vadd.f32 0.0, %v164
    %166 = vmatmul.f32.gmra.mxu0 %v60
    %v167 = vpop.f32.mrf.mxu0
    %v168 = vadd.f32 0.0, %v167
    %169 = vmatmul.f32.gmra.mxu0 %v61
    %v170 = vpop.f32.mrf.mxu0
    %v171 = vadd.f32 0.0, %v170
    %172 = vmatmul.f32.gmra.mxu0 %v62
    %v173 = vpop.f32.mrf.mxu0
    %v174 = vadd.f32 0.0, %v173
    %175 = vmatmul.f32.gmra.mxu0 %v63
    %v176 = vpop.f32.mrf.mxu0
    %v177 = vadd.f32 0.0, %v176
    %178 = vmatmul.f32.gmra.mxu0 %v64
    %v179 = vpop.f32.mrf.mxu0
    %v180 = vadd.f32 0.0, %v179
    %181 = vmatmul.f32.gmra.mxu0 %v65
    %v182 = vpop.f32.mrf.mxu0
    %v183 = vadd.f32 0.0, %v182
    %184 = vmatmul.f32.gmra.mxu0 %v66
    %v185 = vpop.f32.mrf.mxu0
    %v186 = vadd.f32 0.0, %v185
    %187 = vmatmul.f32.gmra.mxu0 %v67
    %v188 = vpop.f32.mrf.mxu0
    %v189 = vadd.f32 0.0, %v188
    %190 = vmatmul.f32.gmra.mxu0 %v68
    %v191 = vpop.f32.mrf.mxu0
    %v192 = vadd.f32 0.0, %v191
    %193 = vmatmul.f32.gmra.mxu0 %v69
    %v194 = vpop.f32.mrf.mxu0
    %v195 = vadd.f32 0.0, %v194
    %196 = vmatmul.f32.gmra.mxu0 %v70
    %v197 = vpop.f32.mrf.mxu0
    %v198 = vadd.f32 0.0, %v197
    %199 = vmatmul.f32.gmra.mxu0 %v71
    %v200 = vpop.f32.mrf.mxu0
    %v201 = vadd.f32 0.0, %v200
    %202 = vmatmul.f32.gmra.mxu0 %v72
    %v203 = vpop.f32.mrf.mxu0
    %v204 = vadd.f32 0.0, %v203
    %205 = vmatmul.f32.gmra.mxu0 %v73
    %v206 = vpop.f32.mrf.mxu0
    %v207 = vadd.f32 0.0, %v206
    %208 = vmatmul.f32.gmra.mxu0 %v74
    %v209 = vpop.f32.mrf.mxu0
    %v210 = vadd.f32 0.0, %v209
    %211 = vmatmul.f32.gmra.mxu0 %v75
    %v212 = vpop.f32.mrf.mxu0
    %v213 = vadd.f32 0.0, %v212
    %214 = vmatmul.f32.gmra.mxu0 %v76
    %v215 = vpop.f32.mrf.mxu0
    %v216 = vadd.f32 0.0, %v215
    %217 = vmatmul.f32.gmra.mxu0 %v77
    %v218 = vpop.f32.mrf.mxu0
    %v219 = vadd.f32 0.0, %v218
    %220 = vmatmul.f32.gmra.mxu0 %v78
    %v221 = vpop.f32.mrf.mxu0
    %v222 = vadd.f32 0.0, %v221
    %223 = vmatmul.f32.gmra.mxu0 %v79
    %v224 = vpop.f32.mrf.mxu0
    %v225 = vadd.f32 0.0, %v224
    %226 = vmatmul.f32.gmra.mxu0 %v80
    %v227 = vpop.f32.mrf.mxu0
    %v228 = vadd.f32 0.0, %v227
    %229 = vmatmul.f32.gmra.mxu0 %v81
    %v230 = vpop.f32.mrf.mxu0
    %v231 = vadd.f32 0.0, %v230
    %232 = vmatmul.f32.gmra.mxu0 %v82
    %v233 = vpop.f32.mrf.mxu0
    %v234 = vadd.f32 0.0, %v233
    %235 = vmatmul.f32.gmra.mxu0 %v83
    %v236 = vpop.f32.mrf.mxu0
    %v237 = vadd.f32 0.0, %v236
    %238 = vmatmul.f32.gmra.mxu0 %v84
    %v239 = vpop.f32.mrf.mxu0
    %v240 = vadd.f32 0.0, %v239
    %241 = vmatmul.f32.gmra.mxu0 %v85
    %v242 = vpop.f32.mrf.mxu0
    %v243 = vadd.f32 0.0, %v242
    %244 = vmatmul.f32.gmra.mxu0 %v86
    %v245 = vpop.f32.mrf.mxu0
    %v246 = vadd.f32 0.0, %v245
    %247 = vmatmul.f32.gmra.mxu0 %v87
    %v248 = vpop.f32.mrf.mxu0
    %v249 = vadd.f32 0.0, %v248
    %250 = vmatmul.f32.gmra.mxu0 %v88
    %v251 = vpop.f32.mrf.mxu0
    %v252 = vadd.f32 0.0, %v251
    %253 = vmatmul.f32.gmra.mxu0 %v89
    %v254 = vpop.f32.mrf.mxu0
    %v255 = vadd.f32 0.0, %v254
    %256 = vmatmul.f32.gmra.mxu0 %v90
    %v257 = vpop.f32.mrf.mxu0
    %v258 = vadd.f32 0.0, %v257
    %259 = vmatmul.f32.gmra.mxu0 %v91
    %v260 = vpop.f32.mrf.mxu0
    %v261 = vadd.f32 0.0, %v260
    %262 = vmatmul.f32.gmra.mxu0 %v92
    %v263 = vpop.f32.mrf.mxu0
    %v264 = vadd.f32 0.0, %v263
    %265 = vmatmul.f32.gmra.mxu0 %v93
    %v266 = vpop.f32.mrf.mxu0
    %v267 = vadd.f32 0.0, %v266
    %268 = vmatmul.f32.gmra.mxu0 %v94
    %v269 = vpop.f32.mrf.mxu0
    %v270 = vadd.f32 0.0, %v269
    %271 = vmatmul.f32.gmra.mxu0 %v95
    %v272 = vpop.f32.mrf.mxu0
    %v273 = vadd.f32 0.0, %v272
    %274 = vmatmul.f32.gmra.mxu0 %v96
    %v275 = vpop.f32.mrf.mxu0
    %v276 = vadd.f32 0.0, %v275
    %277 = vmatmul.f32.gmra.mxu0 %v97
    %v278 = vpop.f32.mrf.mxu0
    %v279 = vadd.f32 0.0, %v278
    %280 = vmatmul.f32.gmra.mxu0 %v98
    %v281 = vpop.f32.mrf.mxu0
    %v282 = vadd.f32 0.0, %v281
    %283 = vmatmul.f32.gmra.mxu0 %v99
    %v284 = vpop.f32.mrf.mxu0
    %v285 = vadd.f32 0.0, %v284
    %286 = vmatmul.f32.gmra.mxu0 %v100
    %v287 = vpop.f32.mrf.mxu0
    %v288 = vadd.f32 0.0, %v287
    %289 = vmatmul.f32.gmra.mxu0 %v101
    %v290 = vpop.f32.mrf.mxu0
    %v291 = vadd.f32 0.0, %v290
    %292 = vmatmul.f32.gmra.mxu0 %v102
    %v293 = vpop.f32.mrf.mxu0
    %v294 = vadd.f32 0.0, %v293
    %295 = vmatmul.f32.gmra.mxu0 %v103
    %v296 = vpop.f32.mrf.mxu0
    %v297 = vadd.f32 0.0, %v296
    %298 = vmatmul.f32.gmra.mxu0 %v104
    %v299 = vpop.f32.mrf.mxu0
    %v300 = vadd.f32 0.0, %v299
    %301 = vmatmul.f32.gmra.mxu0 %v105
    %v302 = vpop.f32.mrf.mxu0
    %v303 = vadd.f32 0.0, %v302
    %304 = vmatmul.f32.gmra.mxu0 %v106
    %v305 = vpop.f32.mrf.mxu0
    %v306 = vadd.f32 0.0, %v305
    %307 = vmatmul.f32.gmra.mxu0 %v107
    %v308 = vpop.f32.mrf.mxu0
    %v309 = vadd.f32 0.0, %v308
    %310 = vmatmul.f32.gmra.mxu0 %v108
    %v311 = vpop.f32.mrf.mxu0
    %v312 = vadd.f32 0.0, %v311
    %313 = vmatmul.f32.gmra.mxu0 %v109
    %v314 = vpop.f32.mrf.mxu0
    %v315 = vadd.f32 0.0, %v314
    %316 = vmatmul.f32.gmra.mxu0 %v110
    %v317 = vpop.f32.mrf.mxu0
    %v318 = vadd.f32 0.0, %v317
    %319 = vmatmul.f32.gmra.mxu0 %v111
    %v320 = vpop.f32.mrf.mxu0
    %v321 = vadd.f32 0.0, %v320
    %322 = vmatmul.f32.gmra.mxu0 %v112
    %v323 = vpop.f32.mrf.mxu0
    %v324 = vadd.f32 0.0, %v323
    %325 = vmatmul.f32.gmra.mxu0 %v113
    %v326 = vpop.f32.mrf.mxu0
    %v327 = vadd.f32 0.0, %v326
    %328 = vmatmul.f32.gmra.mxu0 %v114
    %v329 = vpop.f32.mrf.mxu0
    %v330 = vadd.f32 0.0, %v329
    %331 = vmatmul.f32.gmra.mxu0 %v115
    %v332 = vpop.f32.mrf.mxu0
    %v333 = vadd.f32 0.0, %v332
    %334 = vmatmul.f32.gmra.mxu0 %v116
    %v335 = vpop.f32.mrf.mxu0
    %v336 = vadd.f32 0.0, %v335
    %337 = vmatmul.f32.gmra.mxu0 %v117
    %v338 = vpop.f32.mrf.mxu0
    %v339 = vadd.f32 0.0, %v338
    %340 = vmatmul.f32.gmra.mxu0 %v118
    %v341 = vpop.f32.mrf.mxu0
    %v342 = vadd.f32 0.0, %v341
    %343 = vdwg.mxu0
    %344 = vst [vmem:[#allocation7] sm:$0xff] %v153
    %345 = vst [vmem:[#allocation7 + $0x8] sm:$0xff] %v156
    %346 = vst [vmem:[#allocation7 + $0x10] sm:$0xff] %v159
    %347 = vst [vmem:[#allocation7 + $0x18] sm:$0xff] %v162
    %348 = vst [vmem:[#allocation7 + $0x20] sm:$0xff] %v165
    %349 = vst [vmem:[#allocation7 + $0x28] sm:$0xff] %v168
    %350 = vst [vmem:[#allocation7 + $0x30] sm:$0xff] %v171
    %351 = vst [vmem:[#allocation7 + $0x38] sm:$0xff] %v174
    %352 = vst [vmem:[#allocation7 + $0x40] sm:$0xff] %v177
    %353 = vst [vmem:[#allocation7 + $0x48] sm:$0xff] %v180
    %354 = vst [vmem:[#allocation7 + $0x50] sm:$0xff] %v183
    %355 = vst [vmem:[#allocation7 + $0x58] sm:$0xff] %v186
    %356 = vst [vmem:[#allocation7 + $0x60] sm:$0xff] %v189
    %357 = vst [vmem:[#allocation7 + $0x68] sm:$0xff] %v192
    %358 = vst [vmem:[#allocation7 + $0x70] sm:$0xff] %v195
    %359 = vst [vmem:[#allocation7 + $0x78] sm:$0xff] %v198
    %360 = vst [vmem:[#allocation7 + $0x80] sm:$0xff] %v201
    %361 = vst [vmem:[#allocation7 + $0x88] sm:$0xff] %v204
    %362 = vst [vmem:[#allocation7 + $0x90] sm:$0xff] %v207
    %363 = vst [vmem:[#allocation7 + $0x98] sm:$0xff] %v210
    %364 = vst [vmem:[#allocation7 + $0xa0] sm:$0xff] %v213
    %365 = vst [vmem:[#allocation7 + $0xa8] sm:$0xff] %v216
    %366 = vst [vmem:[#allocation7 + $0xb0] sm:$0xff] %v219
    %367 = vst [vmem:[#allocation7 + $0xb8] sm:$0xff] %v222
    %368 = vst [vmem:[#allocation7 + $0xc0] sm:$0xff] %v225
    %369 = vst [vmem:[#allocation7 + $0xc8] sm:$0xff] %v228
    %370 = vst [vmem:[#allocation7 + $0xd0] sm:$0xff] %v231
    %371 = vst [vmem:[#allocation7 + $0xd8] sm:$0xff] %v234
    %372 = vst [vmem:[#allocation7 + $0xe0] sm:$0xff] %v237
    %373 = vst [vmem:[#allocation7 + $0xe8] sm:$0xff] %v240
    %374 = vst [vmem:[#allocation7 + $0xf0] sm:$0xff] %v243
    %375 = vst [vmem:[#allocation7 + $0xf8] sm:$0xff] %v246
    %376 = vst [vmem:[#allocation7 + $0x100] sm:$0xff] %v249
    %377 = vst [vmem:[#allocation7 + $0x108] sm:$0xff] %v252
    %378 = vst [vmem:[#allocation7 + $0x110] sm:$0xff] %v255
    %379 = vst [vmem:[#allocation7 + $0x118] sm:$0xff] %v258
    %380 = vst [vmem:[#allocation7 + $0x120] sm:$0xff] %v261
    %381 = vst [vmem:[#allocation7 + $0x128] sm:$0xff] %v264
    %382 = vst [vmem:[#allocation7 + $0x130] sm:$0xff] %v267
    %383 = vst [vmem:[#allocation7 + $0x138] sm:$0xff] %v270
    %384 = vst [vmem:[#allocation7 + $0x140] sm:$0xff] %v273
    %385 = vst [vmem:[#allocation7 + $0x148] sm:$0xff] %v276
    %386 = vst [vmem:[#allocation7 + $0x150] sm:$0xff] %v279
    %387 = vst [vmem:[#allocation7 + $0x158] sm:$0xff] %v282
    %388 = vst [vmem:[#allocation7 + $0x160] sm:$0xff] %v285
    %389 = vst [vmem:[#allocation7 + $0x168] sm:$0xff] %v288
    %390 = vst [vmem:[#allocation7 + $0x170] sm:$0xff] %v291
    %391 = vst [vmem:[#allocation7 + $0x178] sm:$0xff] %v294
    %392 = vst [vmem:[#allocation7 + $0x180] sm:$0xff] %v297
    %393 = vst [vmem:[#allocation7 + $0x188] sm:$0xff] %v300
    %394 = vst [vmem:[#allocation7 + $0x190] sm:$0xff] %v303
    %395 = vst [vmem:[#allocation7 + $0x198] sm:$0xff] %v306
    %396 = vst [vmem:[#allocation7 + $0x1a0] sm:$0xff] %v309
    %397 = vst [vmem:[#allocation7 + $0x1a8] sm:$0xff] %v312
    %398 = vst [vmem:[#allocation7 + $0x1b0] sm:$0xff] %v315
    %399 = vst [vmem:[#allocation7 + $0x1b8] sm:$0xff] %v318
    %400 = vst [vmem:[#allocation7 + $0x1c0] sm:$0xff] %v321
    %401 = vst [vmem:[#allocation7 + $0x1c8] sm:$0xff] %v324
    %402 = vst [vmem:[#allocation7 + $0x1d0] sm:$0xff] %v327
    %403 = vst [vmem:[#allocation7 + $0x1d8] sm:$0xff] %v330
    %404 = vst [vmem:[#allocation7 + $0x1e0] sm:$0xff] %v333
    %405 = vst [vmem:[#allocation7 + $0x1e8] sm:$0xff] %v336
    %406 = vst [vmem:[#allocation7 + $0x1f0] sm:$0xff] %v339
    %407 = vst [vmem:[#allocation7 + $0x1f8] sm:$0xff] %v342
    %v408 = vadd.f32 %v153, %v156
    %v409 = vadd.f32 %v408, %v159
    %v410 = vadd.f32 %v409, %v162
    %v411 = vadd.f32 %v410, %v165
    %v412 = vadd.f32 %v411, %v168
    %v413 = vadd.f32 %v412, %v171
    %v414 = vadd.f32 %v413, %v174
    %v415 = vadd.f32 %v414, %v177
    %v416 = vadd.f32 %v415, %v180
    %v417 = vadd.f32 %v416, %v183
    %v418 = vadd.f32 %v417, %v186
    %v419 = vadd.f32 %v418, %v189
    %v420 = vadd.f32 %v419, %v192
    %v421 = vadd.f32 %v420, %v195
    %v422 = vadd.f32 %v421, %v198
    %v423 = vadd.f32 %v422, %v201
    %v424 = vadd.f32 %v423, %v204
    %v425 = vadd.f32 %v424, %v207
    %v426 = vadd.f32 %v425, %v210
    %v427 = vadd.f32 %v426, %v213
    %v428 = vadd.f32 %v427, %v216
    %v429 = vadd.f32 %v428, %v219
    %v430 = vadd.f32 %v429, %v222
    %v431 = vadd.f32 %v430, %v225
    %v432 = vadd.f32 %v431, %v228
    %v433 = vadd.f32 %v432, %v231
    %v434 = vadd.f32 %v433, %v234
    %v435 = vadd.f32 %v434, %v237
    %v436 = vadd.f32 %v435, %v240
    %v437 = vadd.f32 %v436, %v243
    %v438 = vadd.f32 %v437, %v246
    %v439 = vadd.f32 %v438, %v249
    %v440 = vadd.f32 %v439, %v252
    %v441 = vadd.f32 %v440, %v255
    %v442 = vadd.f32 %v441, %v258
    %v443 = vadd.f32 %v442, %v261
    %v444 = vadd.f32 %v443, %v264
    %v445 = vadd.f32 %v444, %v267
    %v446 = vadd.f32 %v445, %v270
    %v447 = vadd.f32 %v446, %v273
    %v448 = vadd.f32 %v447, %v276
    %v449 = vadd.f32 %v448, %v279
    %v450 = vadd.f32 %v449, %v282
    %v451 = vadd.f32 %v450, %v285
    %v452 = vadd.f32 %v451, %v288
    %v453 = vadd.f32 %v452, %v291
    %v454 = vadd.f32 %v453, %v294
    %v455 = vadd.f32 %v454, %v297
    %v456 = vadd.f32 %v455, %v300
    %v457 = vadd.f32 %v456, %v303
    %v458 = vadd.f32 %v457, %v306
    %v459 = vadd.f32 %v458, %v309
    %v460 = vadd.f32 %v459, %v312
    %v461 = vadd.f32 %v460, %v315
    %v462 = vadd.f32 %v461, %v318
    %v463 = vadd.f32 %v462, %v321
    %v464 = vadd.f32 %v463, %v324
    %v465 = vadd.f32 %v464, %v327
    %v466 = vadd.f32 %v465, %v330
    %v467 = vadd.f32 %v466, %v333
    %v468 = vadd.f32 %v467, %v336
    %v469 = vadd.f32 %v468, %v339
    %v470 = vadd.f32 %v469, %v342
    %v471 = vrot.slane %v470, 4
    %v472 = vadd.f32 %v470, %v471
    %v473 = vrot.slane %v472, 2
    %v474 = vadd.f32 %v472, %v473
    %v475 = vrot.slane %v474, 1
    %v476 = vadd.f32 %v474, %v475
    %v477 = vmul.f32 %v153, %v153
    %v478 = vmul.f32 %v156, %v156
    %v479 = vmul.f32 %v159, %v159
    %v480 = vmul.f32 %v162, %v162
    %v481 = vmul.f32 %v165, %v165
    %v482 = vmul.f32 %v168, %v168
    %v483 = vmul.f32 %v171, %v171
    %v484 = vmul.f32 %v174, %v174
    %v485 = vmul.f32 %v177, %v177
    %v486 = vmul.f32 %v180, %v180
    %v487 = vmul.f32 %v183, %v183
    %v488 = vmul.f32 %v186, %v186
    %v489 = vmul.f32 %v189, %v189
    %v490 = vmul.f32 %v192, %v192
    %v491 = vmul.f32 %v195, %v195
    %v492 = vmul.f32 %v198, %v198
    %v493 = vmul.f32 %v201, %v201
    %v494 = vmul.f32 %v204, %v204
    %v495 = vmul.f32 %v207, %v207
    %v496 = vmul.f32 %v210, %v210
    %v497 = vmul.f32 %v213, %v213
    %v498 = vmul.f32 %v216, %v216
    %v499 = vmul.f32 %v219, %v219
    %v500 = vmul.f32 %v222, %v222
    %v501 = vmul.f32 %v225, %v225
    %v502 = vmul.f32 %v228, %v228
    %v503 = vmul.f32 %v231, %v231
    %v504 = vmul.f32 %v234, %v234
    %v505 = vmul.f32 %v237, %v237
    %v506 = vmul.f32 %v240, %v240
    %v507 = vmul.f32 %v243, %v243
    %v508 = vmul.f32 %v246, %v246
    %v509 = vmul.f32 %v249, %v249
    %v510 = vmul.f32 %v252, %v252
    %v511 = vmul.f32 %v255, %v255
    %v512 = vmul.f32 %v258, %v258
    %v513 = vmul.f32 %v261, %v261
    %v514 = vmul.f32 %v264, %v264
    %v515 = vmul.f32 %v267, %v267
    %v516 = vmul.f32 %v270, %v270
    %v517 = vmul.f32 %v273, %v273
    %v518 = vmul.f32 %v276, %v276
    %v519 = vmul.f32 %v279, %v279
    %v520 = vmul.f32 %v282, %v282
    %v521 = vmul.f32 %v285, %v285
    %v522 = vmul.f32 %v288, %v288
    %v523 = vmul.f32 %v291, %v291
    %v524 = vmul.f32 %v294, %v294
    %v525 = vmul.f32 %v297, %v297
    %v526 = vmul.f32 %v300, %v300
    %v527 = vmul.f32 %v303, %v303
    %v528 = vmul.f32 %v306, %v306
    %v529 = vmul.f32 %v309, %v309
    %v530 = vmul.f32 %v312, %v312
    %v531 = vmul.f32 %v315, %v315
    %v532 = vmul.f32 %v318, %v318
    %v533 = vmul.f32 %v321, %v321
    %v534 = vmul.f32 %v324, %v324
    %v535 = vmul.f32 %v327, %v327
    %v536 = vmul.f32 %v330, %v330
    %v537 = vmul.f32 %v333, %v333
    %v538 = vmul.f32 %v336, %v336
    %v539 = vmul.f32 %v339, %v339
    %v540 = vmul.f32 %v342, %v342
    %v541 = vadd.f32 %v477, %v478
    %v542 = vadd.f32 %v541, %v479
    %v543 = vadd.f32 %v542, %v480
    %v544 = vadd.f32 %v543, %v481
    %v545 = vadd.f32 %v544, %v482
    %v546 = vadd.f32 %v545, %v483
    %v547 = vadd.f32 %v546, %v484
    %v548 = vadd.f32 %v547, %v485
    %v549 = vadd.f32 %v548, %v486
    %v550 = vadd.f32 %v549, %v487
    %v551 = vadd.f32 %v550, %v488
    %v552 = vadd.f32 %v551, %v489
    %v553 = vadd.f32 %v552, %v490
    %v554 = vadd.f32 %v553, %v491
    %v555 = vadd.f32 %v554, %v492
    %v556 = vadd.f32 %v555, %v493
    %v557 = vadd.f32 %v556, %v494
    %v558 = vadd.f32 %v557, %v495
    %v559 = vadd.f32 %v558, %v496
    %v560 = vadd.f32 %v559, %v497
    %v561 = vadd.f32 %v560, %v498
    %v562 = vadd.f32 %v561, %v499
    %v563 = vadd.f32 %v562, %v500
    %v564 = vadd.f32 %v563, %v501
    %v565 = vadd.f32 %v564, %v502
    %v566 = vadd.f32 %v565, %v503
    %v567 = vadd.f32 %v566, %v504
    %v568 = vadd.f32 %v567, %v505
    %v569 = vadd.f32 %v568, %v506
    %v570 = vadd.f32 %v569, %v507
    %v571 = vadd.f32 %v570, %v508
    %v572 = vadd.f32 %v571, %v509
    %v573 = vadd.f32 %v572, %v510
    %v574 = vadd.f32 %v573, %v511
    %v575 = vadd.f32 %v574, %v512
    %v576 = vadd.f32 %v575, %v513
    %v577 = vadd.f32 %v576, %v514
    %v578 = vadd.f32 %v577, %v515
    %v579 = vadd.f32 %v578, %v516
    %v580 = vadd.f32 %v579, %v517
    %v581 = vadd.f32 %v580, %v518
    %v582 = vadd.f32 %v581, %v519
    %v583 = vadd.f32 %v582, %v520
    %v584 = vadd.f32 %v583, %v521
    %v585 = vadd.f32 %v584, %v522
    %v586 = vadd.f32 %v585, %v523
    %v587 = vadd.f32 %v586, %v524
    %v588 = vadd.f32 %v587, %v525
    %v589 = vadd.f32 %v588, %v526
    %v590 = vadd.f32 %v589, %v527
    %v591 = vadd.f32 %v590, %v528
    %v592 = vadd.f32 %v591, %v529
    %v593 = vadd.f32 %v592, %v530
    %v594 = vadd.f32 %v593, %v531
    %v595 = vadd.f32 %v594, %v532
    %v596 = vadd.f32 %v595, %v533
    %v597 = vadd.f32 %v596, %v534
    %v598 = vadd.f32 %v597, %v535
    %v599 = vadd.f32 %v598, %v536
    %v600 = vadd.f32 %v599, %v537
    %v601 = vadd.f32 %v600, %v538
    %v602 = vadd.f32 %v601, %v539
    %v603 = vadd.f32 %v602, %v540
    %v604 = vrot.slane %v603, 4
    %v605 = vadd.f32 %v603, %v604
    %v606 = vrot.slane %v605, 2
    %v607 = vadd.f32 %v605, %v606
    %v608 = vrot.slane %v607, 1
    %v609 = vadd.f32 %v607, %v608
    %p610 = scmp.eq.s32.totalorder 0, 0
    // Predicated region
    $region18: #{tpu_custom_call.1} parent=1 // pred_check
      %p611 = pneg %p610
    $region19: #{tpu_custom_call.1} parent=1 // pred_check_branch
      %613 = sbr.rel (%p611) target = $region21
    $region20: #{tpu_custom_call.1} parent=1 // pred_region
      %614 = vst [vmem:[#allocation8] sm:$0xff] 0.0
    $region21: #{tpu_custom_call.1} parent=1 // pred_fallthru
      _
    %v615 = vld [vmem:[#allocation8] sm:$0xff]
    %vm616 = vcmask 1040384
    %v617 = vsel %vm616, %v476, %v609
    %vm618 = vcmask 1041408
    %v619 = vsel %vm618, %v617, 0.0
    %v620 = vadd.f32 %v615, %v619
    %621 = vst [vmem:[#allocation8] sm:$0xff] %v620
    // Predicated region
    $region22: #{tpu_custom_call.1} parent=1 // pred_check
      _
    $region23: #{tpu_custom_call.1} parent=1 // pred_check_branch
      %623 = sbr.rel (0) target = $region25
    $region24: #{tpu_custom_call.1} parent=1 // pred_region
      %s624 = sadd.s32 0, 0
      %s625 = smul.u32 64, %s624
      %627 = vsyncadd [#allocation4], 0
      %s628 = smul.addr %s625, 8
      %s629 = scalar_lea.hbm %s2, %s628
      %s630 = sshll.u32 [#allocation7], 4
      %s631 = int_to_ptr.vmem [resolvable:$true] %s630
      %s632 = sshll.u32 %s629, 4
      %s633 = int_to_ptr.hbm [resolvable:$true] %s632
      %638 = dma.vmem_to_hbm [thread:$0]  %s631, 8192, %s633, [#allocation4], 128, 128, 8
    $region25: #{tpu_custom_call.1} parent=1 // pred_fallthru
      _
    // Predicated region
    $region26: #{tpu_custom_call.1} parent=1 // pred_check
      _
    $region27: #{tpu_custom_call.1} parent=1 // pred_check_branch
      %640 = sbr.rel (0) target = $region29
    $region28: #{tpu_custom_call.1} parent=1 // pred_region
      %642 = vsyncadd [#allocation9], 0
      %s644 = sshll.u32 [#allocation8], 4
      %s645 = int_to_ptr.vmem [resolvable:$true] %s644
      %s646 = sshll.u32 %s3, 4
      %s647 = int_to_ptr.hbm [resolvable:$true] %s646
      %649 = dma.vmem_to_hbm [thread:$0]  %s645, 128, %s647, [#allocation9]
    $region29: #{tpu_custom_call.1} parent=1 // pred_fallthru
      _
    // Predicated region
    $region30: #{tpu_custom_call.1} parent=1 // pred_check
      _
    $region31: #{tpu_custom_call.1} parent=1 // pred_check_branch
      %651 = sbr.rel (0) target = $region33
    $region32: #{tpu_custom_call.1} parent=1 // pred_region
      %653 = dma.done [#allocation4], 8192
    $region33: #{tpu_custom_call.1} parent=1 // pred_fallthru
      _
    // Predicated region
    $region34: #{tpu_custom_call.1} parent=1 // pred_check
      _
    $region35: #{tpu_custom_call.1} parent=1 // pred_check_branch
      %655 = sbr.rel (0) target = $region37
    $region36: #{tpu_custom_call.1} parent=1 // pred_region
      %657 = dma.done [#allocation9], 128
    $region37: #{tpu_custom_call.1} parent=1 // pred_fallthru
      _
    %658 = vsyncpa [#allocation3], 1
    %659 = vsyncpa [#allocation6], 1
    %660 = vsyncpa [#allocation4], 1
    %661 = vsyncpa [#allocation9], 1

</llo_original>
